<compile_context>
chip_gen: v7x
topology: tpu7x:2x2x1
jax: 0.10.0
libtpu: 0.0.40
codegen_flags: <defaults>
</compile_context>

<pallas_src>
import functools

import jax
import jax.numpy as jnp
import numpy as np
from jax.experimental import pallas as pl
from jax.experimental.pallas import tpu as pltpu

_BN_EPS = 1e-5


def _round_up(a, b):
    return (a + b - 1) // b * b


def _fr_pass1_kernel(x1_ref, x2_ref, w1_ref, w2_ref, gamma_ref, beta_ref,
                     y_ref, stats_ref, *, c_half, inv_n):
    """ReLU + two 1x1 stride-2 convs (channel matmuls) + BN sum/sumsq accumulation."""
    i = pl.program_id(0)

    @pl.when(i == 0)
    def _():
        stats_ref[...] = jnp.zeros_like(stats_ref)

    # ReLU in the input dtype (bf16 stays bf16 on v6e/v7x; promoted on v5e).
    x1 = jnp.maximum(x1_ref[...], 0)
    x2 = jnp.maximum(x2_ref[...], 0)

    # 1x1 stride-2 convs == channel matmuls; accumulate in f32 on the MXU.
    # (Tiny channel counts under-utilize the MXU; for real models pad C to >=128.)
    y1 = jnp.dot(x1, w1_ref[...], preferred_element_type=jnp.float32)
    y2 = jnp.dot(x2, w2_ref[...], preferred_element_type=jnp.float32)

    # Channel concat == direct writes into the two halves of the output tile.
    y_ref[:, :c_half] = y1
    y_ref[:, c_half:] = y2

    # Per-channel partial sums into the resident f32 accumulator (XLU work).
    stats_ref[0:1, :c_half] += jnp.sum(y1, axis=0, keepdims=True)
    stats_ref[0:1, c_half:] += jnp.sum(y2, axis=0, keepdims=True)
    stats_ref[1:2, :c_half] += jnp.sum(y1 * y1, axis=0, keepdims=True)
    stats_ref[1:2, c_half:] += jnp.sum(y2 * y2, axis=0, keepdims=True)

    # Finalize: convert (sum, sumsq) into a fused BN (scale, shift).
    @pl.when(i == pl.num_programs(0) - 1)
    def _():
        mean = stats_ref[0:1, :] * inv_n
        var = stats_ref[1:2, :] * inv_n - mean * mean      # biased (training-mode) variance
        inv_std = jax.lax.rsqrt(var + _BN_EPS)
        scale = gamma_ref[...] * inv_std
        shift = beta_ref[...] - mean * scale
        stats_ref[0:1, :] = scale
        stats_ref[1:2, :] = shift


def _fr_pass2_kernel(y_ref, stats_ref, o_ref):
    """Apply the fused BN affine per tile: out = y * scale + shift."""
    scale = stats_ref[0:1, :]
    shift = stats_ref[1:2, :]
    o_ref[...] = (y_ref[...] * scale + shift).astype(o_ref.dtype)


@jax.jit
def factorized_reduce(x, w1, w2, gamma, beta):
    """x: (N, C_in, H, W) NCHW; w1/w2: (C_half, C_in, 1, 1); gamma/beta: (C_out,)."""
    N, C_in, H, W = x.shape
    assert H % 2 == 0 and W % 2 == 0, "even spatial dims required (torch.cat constraint)"
    C_half = w1.shape[0]
    C_out = 2 * C_half
    Ho, Wo = H // 2, W // 2
    P = N * Ho * Wo

    # --- glue: strided spatial gather + NCHW -> pixel-major (P, C_in).
    # TODO(synk): an NHWC-native producer/consumer could feed the kernel directly
    # and skip these transposes (and the final one), removing extra HBM round-trips.
    x1 = jnp.transpose(x[:, :, 0::2, 0::2], (0, 2, 3, 1)).reshape(P, C_in)
    x2 = jnp.transpose(x[:, :, 1::2, 1::2], (0, 2, 3, 1)).reshape(P, C_in)

    # Conv weights (C_half, C_in, 1, 1) -> (C_in, C_half); cast ONCE here to the
    # activation dtype so the MXU runs its native (e.g. bf16 x bf16 -> f32) path.
    w1m = jnp.transpose(w1[:, :, 0, 0], (1, 0)).astype(x.dtype)
    w2m = jnp.transpose(w2[:, :, 0, 0], (1, 0)).astype(x.dtype)
    gamma2 = gamma.reshape(1, C_out).astype(jnp.float32)
    beta2 = beta.reshape(1, C_out).astype(jnp.float32)

    # --- pixel tiling: pad P up to a tile multiple (zero rows stay zero through
    # ReLU+matmul, so the batch statistics with the true-P divisor remain exact).
    TILE_P = 1024 if P >= 1024 else _round_up(P, 8)
    P_pad = _round_up(P, TILE_P)
    if P_pad != P:
        pad = P_pad - P
        x1 = jnp.pad(x1, ((0, pad), (0, 0)))
        x2 = jnp.pad(x2, ((0, pad), (0, 0)))
    num_tiles = P_pad // TILE_P

    in_bytes = x.dtype.itemsize
    lane_cin = _round_up(C_in, 128)     # lane-padded footprints for VMEM sizing
    lane_cout = _round_up(C_out, 128)

    # Double-buffered streamed blocks + resident weights/stats, 2x headroom,
    # capped well below v7x's 64 MiB physical VMEM.
    vmem1 = (2 * (2 * TILE_P * lane_cin * in_bytes + TILE_P * lane_cout * 4)
             + 2 * _round_up(C_in, 8) * _round_up(C_half, 128) * in_bytes
             + 32 * lane_cout * 4)
    vmem1 = int(min(max(2 * vmem1, 8 << 20), 48 << 20))
    vmem2 = 2 * (TILE_P * lane_cout * 4 + TILE_P * lane_cout * in_bytes) + 32 * lane_cout * 4
    vmem2 = int(min(max(2 * vmem2, 8 << 20), 48 << 20))

    cost1 = pl.CostEstimate(
        flops=2 * P * C_in * C_out,
        transcendentals=C_out,
        bytes_accessed=(2 * P * C_in * in_bytes + P * C_out * 4
                        + 2 * C_in * C_half * in_bytes + 4 * C_out * 4))
    cost2 = pl.CostEstimate(
        flops=2 * P * C_out,
        transcendentals=0,
        bytes_accessed=P * C_out * 4 + P * C_out * in_bytes + 2 * C_out * 4)

    # ---- pass 1: ReLU + convs + stat accumulation (sequential over tiles).
    y_unnorm, stats = pl.pallas_call(
        functools.partial(_fr_pass1_kernel, c_half=C_half, inv_n=1.0 / P),
        grid=(num_tiles,),
        in_specs=[
            pl.BlockSpec((TILE_P, C_in), lambda i: (i, 0)),
            pl.BlockSpec((TILE_P, C_in), lambda i: (i, 0)),
            pl.BlockSpec((C_in, C_half), lambda i: (0, 0)),
            pl.BlockSpec((C_in, C_half), lambda i: (0, 0)),
            pl.BlockSpec((1, C_out), lambda i: (0, 0)),
            pl.BlockSpec((1, C_out), lambda i: (0, 0)),
        ],
        out_specs=[
            pl.BlockSpec((TILE_P, C_out), lambda i: (i, 0)),
            pl.BlockSpec((2, C_out), lambda i: (0, 0)),
        ],
        out_shape=[
            jax.ShapeDtypeStruct((P_pad, C_out), jnp.float32),
            jax.ShapeDtypeStruct((2, C_out), jnp.float32),
        ],
        compiler_params=pltpu.CompilerParams(
            dimension_semantics=("arbitrary",),
            vmem_limit_bytes=vmem1),
        cost_estimate=cost1,
    )(x1, x2, w1m, w2m, gamma2, beta2)

    # ---- pass 2: normalization (embarrassingly parallel over tiles -> megacore).
    out_flat = pl.pallas_call(
        _fr_pass2_kernel,
        grid=(num_tiles,),
        in_specs=[
            pl.BlockSpec((TILE_P, C_out), lambda i: (i, 0)),
            pl.BlockSpec((2, C_out), lambda i: (0, 0)),
        ],
        out_specs=pl.BlockSpec((TILE_P, C_out), lambda i: (i, 0)),
        out_shape=jax.ShapeDtypeStruct((P_pad, C_out), x.dtype),
        compiler_params=pltpu.CompilerParams(
            dimension_semantics=("parallel",),
            vmem_limit_bytes=vmem2),
        cost_estimate=cost2,
    )(y_unnorm, stats)

    # back to NCHW (drop padded rows).
    out = out_flat[:P].reshape(N, Ho, Wo, C_out)
    return jnp.transpose(out, (0, 3, 1, 2))


def _reference(x, w1, w2, gamma, beta):
    """Pure-JAX reference matching the PyTorch forward (training-mode BN)."""
    xr = jnp.maximum(x, 0.0)
    x1 = xr[:, :, 0::2, 0::2]
    x2 = xr[:, :, 1::2, 1::2]
    y1 = jnp.einsum("ncij,oc->noij", x1, w1[:, :, 0, 0])
    y2 = jnp.einsum("ncij,oc->noij", x2, w2[:, :, 0, 0])
    y = jnp.concatenate([y1, y2], axis=1)
    mean = jnp.mean(y, axis=(0, 2, 3), keepdims=True)
    var = jnp.mean((y - mean) ** 2, axis=(0, 2, 3), keepdims=True)
    yhat = (y - mean) * jax.lax.rsqrt(var + _BN_EPS)
    return yhat * gamma.reshape(1, -1, 1, 1) + beta.reshape(1, -1, 1, 1)


if __name__ == "__main__":
    # Small shapes consistent with the module: N=2, C_in=4, H=W=16, C_out=8.
    N, C_in, H, W = 2, 4, 16, 16
    C_out = 8
    C_half = C_out // 2

    key = jax.random.PRNGKey(0)
    kx, k1, k2 = jax.random.split(key, 3)
    x = jax.random.normal(kx, (N, C_in, H, W), dtype=jnp.float32)
    # Deterministic synthetic params (shapes match nn.Conv2d / nn.BatchNorm2d).
    w1 = jax.random.normal(k1, (C_half, C_in, 1, 1), dtype=jnp.float32) * 0.5
    w2 = jax.random.normal(k2, (C_half, C_in, 1, 1), dtype=jnp.float32) * 0.5
    gamma = jnp.ones((C_out,), dtype=jnp.float32)   # BatchNorm affine weight init
    beta = jnp.zeros((C_out,), dtype=jnp.float32)   # BatchNorm affine bias init

    out = factorized_reduce(x, w1, w2, gamma, beta)
    out = jax.block_until_ready(out)

    ref = _reference(x, w1, w2, gamma, beta)
    assert out.shape == (N, C_out, H // 2, W // 2), out.shape
    np.testing.assert_allclose(np.asarray(out), np.asarray(ref), rtol=1e-4, atol=1e-4)

    print("KERNEL_OK")
</pallas_src>

<mosaic_0001>
module attributes {stable_mosaic.version = 11 : i64} {
  func.func @_fr_pass2_kernel(%arg0: i32, %arg1: memref<128x8xf32, #tpu.memory_space<vmem>>, %arg2: memref<2x8xf32, #tpu.memory_space<vmem>>, %arg3: memref<128x8xf32, #tpu.memory_space<vmem>>) attributes {dimension_semantics = [#tpu.dimension_semantics<parallel>], iteration_bounds = array<i64: 1>, scalar_prefetch = 0 : i64, scratch_operands = 0 : i64, tpu.core_type = #tpu.core_type<tc>, window_params = [{transform_indices = @transform_0, window_bounds = array<i64: 128, 8>}, {pipeline_mode = #tpu.pipeline_mode<synchronous>, transform_indices = @transform_1, window_bounds = array<i64: 2, 8>}, {transform_indices = @transform_2, window_bounds = array<i64: 128, 8>}]} {
    %c0 = arith.constant 0 : index
    %c0_0 = arith.constant 0 : index
    %0 = vector.load %arg2[%c0, %c0_0] : memref<2x8xf32, #tpu.memory_space<vmem>>, vector<1x8xf32>
    %c1 = arith.constant 1 : index
    %c0_1 = arith.constant 0 : index
    %1 = vector.load %arg2[%c1, %c0_1] : memref<2x8xf32, #tpu.memory_space<vmem>>, vector<1x8xf32>
    %c0_2 = arith.constant 0 : index
    %c0_3 = arith.constant 0 : index
    %2 = vector.load %arg1[%c0_2, %c0_3] : memref<128x8xf32, #tpu.memory_space<vmem>>, vector<128x8xf32>
    %3 = vector.broadcast %0 : vector<1x8xf32> to vector<128x8xf32>
    %4 = arith.mulf %2, %3 : vector<128x8xf32>
    %5 = vector.broadcast %1 : vector<1x8xf32> to vector<128x8xf32>
    %6 = arith.addf %4, %5 : vector<128x8xf32>
    %c0_4 = arith.constant 0 : index
    %c0_5 = arith.constant 0 : index
    %7 = vector.load %arg3[%c0_4, %c0_5] : memref<128x8xf32, #tpu.memory_space<vmem>>, vector<128x8xf32>
    tpu.vector_store %arg3[%c0_4, %c0_5], %6 {strides = array<i32>} : memref<128x8xf32, #tpu.memory_space<vmem>>, vector<128x8xf32>,
    return
  }
  func.func @transform_0(%arg0: i32) -> (i32, i32) {
    %c0_i32 = arith.constant 0 : i32
    %c0_i32_0 = arith.constant 0 : i32
    return %arg0, %c0_i32 : i32, i32
  }
  func.func @transform_1(%arg0: i32) -> (i32, i32) {
    %c0_i32 = arith.constant 0 : i32
    %c0_i32_0 = arith.constant 0 : i32
    %c0_i32_1 = arith.constant 0 : i32
    return %c0_i32, %c0_i32_0 : i32, i32
  }
  func.func @transform_2(%arg0: i32) -> (i32, i32) {
    %c0_i32 = arith.constant 0 : i32
    %c0_i32_0 = arith.constant 0 : i32
    return %arg0, %c0_i32 : i32, i32
  }
}

module attributes {stable_mosaic.version = 11 : i64} {
  func.func @_fr_pass1_kernel(%arg0: i32, %arg1: memref<128x4xf32, #tpu.memory_space<vmem>>, %arg2: memref<128x4xf32, #tpu.memory_space<vmem>>, %arg3: memref<4x4xf32, #tpu.memory_space<vmem>>, %arg4: memref<4x4xf32, #tpu.memory_space<vmem>>, %arg5: memref<1x8xf32, #tpu.memory_space<vmem>>, %arg6: memref<1x8xf32, #tpu.memory_space<vmem>>, %arg7: memref<128x8xf32, #tpu.memory_space<vmem>>, %arg8: memref<2x8xf32, #tpu.memory_space<vmem>>) attributes {dimension_semantics = [#tpu.dimension_semantics<arbitrary>], iteration_bounds = array<i64: 1>, scalar_prefetch = 0 : i64, scratch_operands = 0 : i64, tpu.core_type = #tpu.core_type<tc>, window_params = [{transform_indices = @transform_0, window_bounds = array<i64: 128, 4>}, {transform_indices = @transform_1, window_bounds = array<i64: 128, 4>}, {pipeline_mode = #tpu.pipeline_mode<synchronous>, transform_indices = @transform_2, window_bounds = array<i64: 4, 4>}, {pipeline_mode = #tpu.pipeline_mode<synchronous>, transform_indices = @transform_3, window_bounds = array<i64: 4, 4>}, {pipeline_mode = #tpu.pipeline_mode<synchronous>, transform_indices = @transform_4, window_bounds = array<i64: 1, 8>}, {pipeline_mode = #tpu.pipeline_mode<synchronous>, transform_indices = @transform_5, window_bounds = array<i64: 1, 8>}, {transform_indices = @transform_6, window_bounds = array<i64: 128, 8>}, {pipeline_mode = #tpu.pipeline_mode<synchronous>, transform_indices = @transform_7, window_bounds = array<i64: 2, 8>}]} {
    %c0_i32 = arith.constant 0 : i32
    %0 = arith.cmpi eq, %arg0, %c0_i32 : i32
    %1 = arith.extui %0 : i1 to i32
    %c0_i32_0 = arith.constant 0 : i32
    %2 = arith.cmpi ne, %1, %c0_i32_0 : i32
    scf.if %2 {
      %cst_35 = arith.constant 0.000000e+00 : f32
      %40 = vector.broadcast %cst_35 : f32 to vector<2x8xf32>
      %c0_36 = arith.constant 0 : index
      %c0_37 = arith.constant 0 : index
      %41 = vector.load %arg8[%c0_36, %c0_37] : memref<2x8xf32, #tpu.memory_space<vmem>>, vector<2x8xf32>
      tpu.vector_store %arg8[%c0_36, %c0_37], %40 {strides = array<i32>} : memref<2x8xf32, #tpu.memory_space<vmem>>, vector<2x8xf32>,
    } else {
    }
    %c0 = arith.constant 0 : index
    %c0_1 = arith.constant 0 : index
    %3 = vector.load %arg1[%c0, %c0_1] : memref<128x4xf32, #tpu.memory_space<vmem>>, vector<128x4xf32>
    %cst = arith.constant 0.000000e+00 : f32
    %4 = vector.broadcast %cst : f32 to vector<128x4xf32>
    %5 = arith.maximumf %3, %4 : vector<128x4xf32>
    %c0_2 = arith.constant 0 : index
    %c0_3 = arith.constant 0 : index
    %6 = vector.load %arg2[%c0_2, %c0_3] : memref<128x4xf32, #tpu.memory_space<vmem>>, vector<128x4xf32>
    %cst_4 = arith.constant 0.000000e+00 : f32
    %7 = vector.broadcast %cst_4 : f32 to vector<128x4xf32>
    %8 = arith.maximumf %6, %7 : vector<128x4xf32>
    %c0_5 = arith.constant 0 : index
    %c0_6 = arith.constant 0 : index
    %9 = vector.load %arg3[%c0_5, %c0_6] : memref<4x4xf32, #tpu.memory_space<vmem>>, vector<4x4xf32>
    %cst_7 = arith.constant dense<0.000000e+00> : vector<128x4xf32>
    %10 = tpu.matmul %5, %9, %cst_7 {dimension_numbers = #tpu.dot_dimension_numbers<[1], [0], [0], [1], [0, 0, 1, 1], [], []>} : vector<128x4xf32>, vector<4x4xf32>, vector<128x4xf32> -> vector<128x4xf32>
    %c0_8 = arith.constant 0 : index
    %c0_9 = arith.constant 0 : index
    %11 = vector.load %arg4[%c0_8, %c0_9] : memref<4x4xf32, #tpu.memory_space<vmem>>, vector<4x4xf32>
    %cst_10 = arith.constant dense<0.000000e+00> : vector<128x4xf32>
    %12 = tpu.matmul %8, %11, %cst_10 {dimension_numbers = #tpu.dot_dimension_numbers<[1], [0], [0], [1], [0, 0, 1, 1], [], []>} : vector<128x4xf32>, vector<4x4xf32>, vector<128x4xf32> -> vector<128x4xf32>
    %c0_11 = arith.constant 0 : index
    %c0_12 = arith.constant 0 : index
    %13 = vector.load %arg7[%c0_11, %c0_12] : memref<128x8xf32, #tpu.memory_space<vmem>>, vector<128x4xf32>
    tpu.vector_store %arg7[%c0_11, %c0_12], %10 {strides = array<i32>} : memref<128x8xf32, #tpu.memory_space<vmem>>, vector<128x4xf32>,
    %c0_13 = arith.constant 0 : index
    %c4 = arith.constant 4 : index
    %14 = vector.load %arg7[%c0_13, %c4] : memref<128x8xf32, #tpu.memory_space<vmem>>, vector<128x4xf32>
    tpu.vector_store %arg7[%c0_13, %c4], %12 {strides = array<i32>} : memref<128x8xf32, #tpu.memory_space<vmem>>, vector<128x4xf32>,
    %c0_14 = arith.constant 0 : index
    %c0_15 = arith.constant 0 : index
    %15 = vector.load %arg8[%c0_14, %c0_15] : memref<2x8xf32, #tpu.memory_space<vmem>>, vector<1x4xf32>
    %cst_16 = arith.constant dense<0.000000e+00> : vector<4xf32>
    %16 = vector.multi_reduction <add>, %10, %cst_16 [0] : vector<128x4xf32> to vector<4xf32>
    %17 = vector.shape_cast %16 : vector<4xf32> to vector<1x4xf32>
    %18 = arith.addf %15, %17 : vector<1x4xf32>
    %c0_17 = arith.constant 0 : index
    %c0_18 = arith.constant 0 : index
    %19 = vector.load %arg8[%c0_17, %c0_18] : memref<2x8xf32, #tpu.memory_space<vmem>>, vector<1x4xf32>
    tpu.vector_store %arg8[%c0_17, %c0_18], %18 {strides = array<i32>} : memref<2x8xf32, #tpu.memory_space<vmem>>, vector<1x4xf32>,
    %c0_19 = arith.constant 0 : index
    %c4_20 = arith.constant 4 : index
    %20 = vector.load %arg8[%c0_19, %c4_20] : memref<2x8xf32, #tpu.memory_space<vmem>>, vector<1x4xf32>
    %cst_21 = arith.constant dense<0.000000e+00> : vector<4xf32>
    %21 = vector.multi_reduction <add>, %12, %cst_21 [0] : vector<128x4xf32> to vector<4xf32>
    %22 = vector.shape_cast %21 : vector<4xf32> to vector<1x4xf32>
    %23 = arith.addf %20, %22 : vector<1x4xf32>
    %c0_22 = arith.constant 0 : index
    %c4_23 = arith.constant 4 : index
    %24 = vector.load %arg8[%c0_22, %c4_23] : memref<2x8xf32, #tpu.memory_space<vmem>>, vector<1x4xf32>
    tpu.vector_store %arg8[%c0_22, %c4_23], %23 {strides = array<i32>} : memref<2x8xf32, #tpu.memory_space<vmem>>, vector<1x4xf32>,
    %c1 = arith.constant 1 : index
    %c0_24 = arith.constant 0 : index
    %25 = vector.load %arg8[%c1, %c0_24] : memref<2x8xf32, #tpu.memory_space<vmem>>, vector<1x4xf32>
    %26 = arith.mulf %10, %10 : vector<128x4xf32>
    %cst_25 = arith.constant dense<0.000000e+00> : vector<4xf32>
    %27 = vector.multi_reduction <add>, %26, %cst_25 [0] : vector<128x4xf32> to vector<4xf32>
    %28 = vector.shape_cast %27 : vector<4xf32> to vector<1x4xf32>
    %29 = arith.addf %25, %28 : vector<1x4xf32>
    %c1_26 = arith.constant 1 : index
    %c0_27 = arith.constant 0 : index
    %30 = vector.load %arg8[%c1_26, %c0_27] : memref<2x8xf32, #tpu.memory_space<vmem>>, vector<1x4xf32>
    tpu.vector_store %arg8[%c1_26, %c0_27], %29 {strides = array<i32>} : memref<2x8xf32, #tpu.memory_space<vmem>>, vector<1x4xf32>,
    %c1_28 = arith.constant 1 : index
    %c4_29 = arith.constant 4 : index
    %31 = vector.load %arg8[%c1_28, %c4_29] : memref<2x8xf32, #tpu.memory_space<vmem>>, vector<1x4xf32>
    %32 = arith.mulf %12, %12 : vector<128x4xf32>
    %cst_30 = arith.constant dense<0.000000e+00> : vector<4xf32>
    %33 = vector.multi_reduction <add>, %32, %cst_30 [0] : vector<128x4xf32> to vector<4xf32>
    %34 = vector.shape_cast %33 : vector<4xf32> to vector<1x4xf32>
    %35 = arith.addf %31, %34 : vector<1x4xf32>
    %c1_31 = arith.constant 1 : index
    %c4_32 = arith.constant 4 : index
    %36 = vector.load %arg8[%c1_31, %c4_32] : memref<2x8xf32, #tpu.memory_space<vmem>>, vector<1x4xf32>
    tpu.vector_store %arg8[%c1_31, %c4_32], %35 {strides = array<i32>} : memref<2x8xf32, #tpu.memory_space<vmem>>, vector<1x4xf32>,
    %c0_i32_33 = arith.constant 0 : i32
    %37 = arith.cmpi eq, %arg0, %c0_i32_33 : i32
    %38 = arith.extui %37 : i1 to i32
    %c0_i32_34 = arith.constant 0 : i32
    %39 = arith.cmpi ne, %38, %c0_i32_34 : i32
    scf.if %39 {
      %c0_35 = arith.constant 0 : index
      %c0_36 = arith.constant 0 : index
      %40 = vector.load %arg8[%c0_35, %c0_36] : memref<2x8xf32, #tpu.memory_space<vmem>>, vector<1x8xf32>
      %cst_37 = arith.constant 7.812500e-03 : f32
      %41 = vector.broadcast %cst_37 : f32 to vector<1x8xf32>
      %42 = arith.mulf %40, %41 : vector<1x8xf32>
      %c1_38 = arith.constant 1 : index
      %c0_39 = arith.constant 0 : index
      %43 = vector.load %arg8[%c1_38, %c0_39] : memref<2x8xf32, #tpu.memory_space<vmem>>, vector<1x8xf32>
      %cst_40 = arith.constant 7.812500e-03 : f32
      %44 = vector.broadcast %cst_40 : f32 to vector<1x8xf32>
      %45 = arith.mulf %43, %44 : vector<1x8xf32>
      %46 = arith.mulf %42, %42 : vector<1x8xf32>
      %47 = arith.subf %45, %46 : vector<1x8xf32>
      %cst_41 = arith.constant 9.99999974E-6 : f32
      %48 = vector.broadcast %cst_41 : f32 to vector<1x8xf32>
      %49 = arith.addf %47, %48 : vector<1x8xf32>
      %50 = math.rsqrt %49 : vector<1x8xf32>
      %c0_42 = arith.constant 0 : index
      %c0_43 = arith.constant 0 : index
      %51 = vector.load %arg5[%c0_42, %c0_43] : memref<1x8xf32, #tpu.memory_space<vmem>>, vector<1x8xf32>
      %52 = arith.mulf %51, %50 : vector<1x8xf32>
      %c0_44 = arith.constant 0 : index
      %c0_45 = arith.constant 0 : index
      %53 = vector.load %arg6[%c0_44, %c0_45] : memref<1x8xf32, #tpu.memory_space<vmem>>, vector<1x8xf32>
      %54 = arith.mulf %42, %52 : vector<1x8xf32>
      %55 = arith.subf %53, %54 : vector<1x8xf32>
      %c0_46 = arith.constant 0 : index
      %c0_47 = arith.constant 0 : index
      %56 = vector.load %arg8[%c0_46, %c0_47] : memref<2x8xf32, #tpu.memory_space<vmem>>, vector<1x8xf32>
      tpu.vector_store %arg8[%c0_46, %c0_47], %52 {strides = array<i32>} : memref<2x8xf32, #tpu.memory_space<vmem>>, vector<1x8xf32>,
      %c1_48 = arith.constant 1 : index
      %c0_49 = arith.constant 0 : index
      %57 = vector.load %arg8[%c1_48, %c0_49] : memref<2x8xf32, #tpu.memory_space<vmem>>, vector<1x8xf32>
      tpu.vector_store %arg8[%c1_48, %c0_49], %55 {strides = array<i32>} : memref<2x8xf32, #tpu.memory_space<vmem>>, vector<1x8xf32>,
    } else {
    }
    return
  }
  func.func @transform_0(%arg0: i32) -> (i32, i32) {
    %c0_i32 = arith.constant 0 : i32
    %c0_i32_0 = arith.constant 0 : i32
    return %arg0, %c0_i32 : i32, i32
  }
  func.func @transform_1(%arg0: i32) -> (i32, i32) {
    %c0_i32 = arith.constant 0 : i32
    %c0_i32_0 = arith.constant 0 : i32
    return %arg0, %c0_i32 : i32, i32
  }
  func.func @transform_2(%arg0: i32) -> (i32, i32) {
    %c0_i32 = arith.constant 0 : i32
    %c0_i32_0 = arith.constant 0 : i32
    %c0_i32_1 = arith.constant 0 : i32
    return %c0_i32, %c0_i32_0 : i32, i32
  }
  func.func @transform_3(%arg0: i32) -> (i32, i32) {
    %c0_i32 = arith.constant 0 : i32
    %c0_i32_0 = arith.constant 0 : i32
    %c0_i32_1 = arith.constant 0 : i32
    return %c0_i32, %c0_i32_0 : i32, i32
  }
  func.func @transform_4(%arg0: i32) -> (i32, i32) {
    %c0_i32 = arith.constant 0 : i32
    %c0_i32_0 = arith.constant 0 : i32
    %c0_i32_1 = arith.constant 0 : i32
    return %c0_i32, %c0_i32_0 : i32, i32
  }
  func.func @transform_5(%arg0: i32) -> (i32, i32) {
    %c0_i32 = arith.constant 0 : i32
    %c0_i32_0 = arith.constant 0 : i32
    %c0_i32_1 = arith.constant 0 : i32
    return %c0_i32, %c0_i32_0 : i32, i32
  }
  func.func @transform_6(%arg0: i32) -> (i32, i32) {
    %c0_i32 = arith.constant 0 : i32
    %c0_i32_0 = arith.constant 0 : i32
    return %arg0, %c0_i32 : i32, i32
  }
  func.func @transform_7(%arg0: i32) -> (i32, i32) {
    %c0_i32 = arith.constant 0 : i32
    %c0_i32_0 = arith.constant 0 : i32
    %c0_i32_1 = arith.constant 0 : i32
    return %c0_i32, %c0_i32_0 : i32, i32
  }
}

</mosaic_0001>

<llo_original>
// kernel: factorized_reduce.3
$region0: #{factorized_reduce.3}
  #allocation0 [shape = 'u32[]', space=smem, size = 0x4, offset = 0x4, fixed_abs, tag = 'smem constant byte address 0x4 - core index']
  #allocation1 [shape = 'u32[144,128]{1,0:T(1,128)}', space=vmem, size = 0x12000, scoped, tag = 'internal scratch']
  %s0 = inlined_call_operand.vmem [shape: f32[128,8], index: 0, kind: input, shape index: {}]
  %s1 = inlined_call_operand.vmem [shape: f32[2,8], index: 1, kind: input, shape index: {}]
  %s2 = inlined_call_operand.vmem [shape: f32[128,8], index: 2, kind: output, shape index: {}]
  %s3 = sld [smem:[#allocation0]]
  $region18: #{factorized_reduce.3} parent=0
    _
  %s5 = ssub.s32 1, %s3
  %s6 = scalar_select 0, %s5, %s3
  // Predicated region
  $region2: #{factorized_reduce.3} parent=0 // pred_check
    _
  $region3: #{factorized_reduce.3} parent=0 // pred_check_branch
    %8 = sbr.rel (0) target = $region5
  $region4: #{factorized_reduce.3} parent=0 // pred_region
    _
  $region5: #{factorized_reduce.3} parent=0 // pred_fallthru
    _
  // Predicated region
  $region6: #{factorized_reduce.3} parent=0 // pred_check
    _
  $region7: #{factorized_reduce.3} parent=0 // pred_check_branch
    %10 = sbr.rel (0) target = $region9
  $region8: #{factorized_reduce.3} parent=0 // pred_region
    _
  $region9: #{factorized_reduce.3} parent=0 // pred_fallthru
    _
  %v11 = vld [vmem:[%s1] sm:$0x1]
  %v12 = vld [vmem:[%s1 + $0x1] sm:$0x1]
  %v13 = vld [vmem:[%s0] sm:$0xff]
  %v14 = vld [vmem:[%s0 + $0x8] sm:$0xff]
  %v15 = vld [vmem:[%s0 + $0x10] sm:$0xff]
  %v16 = vld [vmem:[%s0 + $0x18] sm:$0xff]
  %v17 = vld [vmem:[%s0 + $0x20] sm:$0xff]
  %v18 = vld [vmem:[%s0 + $0x28] sm:$0xff]
  %v19 = vld [vmem:[%s0 + $0x30] sm:$0xff]
  %v20 = vld [vmem:[%s0 + $0x38] sm:$0xff]
  %v21 = vld [vmem:[%s0 + $0x40] sm:$0xff]
  %v22 = vld [vmem:[%s0 + $0x48] sm:$0xff]
  %v23 = vld [vmem:[%s0 + $0x50] sm:$0xff]
  %v24 = vld [vmem:[%s0 + $0x58] sm:$0xff]
  %v25 = vld [vmem:[%s0 + $0x60] sm:$0xff]
  %v26 = vld [vmem:[%s0 + $0x68] sm:$0xff]
  %v27 = vld [vmem:[%s0 + $0x70] sm:$0xff]
  %v28 = vld [vmem:[%s0 + $0x78] sm:$0xff]
  %v29 = vlaneseq
  %v30 = vshrl.u32 %v29, 7
  %v31 = vsub.s32 0, %v30
  %v32 = vrot.slane %v11, %v31
  %v33 = vmul.f32 %v13, %v32
  %v34 = vmul.f32 %v14, %v32
  %v35 = vmul.f32 %v15, %v32
  %v36 = vmul.f32 %v16, %v32
  %v37 = vmul.f32 %v17, %v32
  %v38 = vmul.f32 %v18, %v32
  %v39 = vmul.f32 %v19, %v32
  %v40 = vmul.f32 %v20, %v32
  %v41 = vmul.f32 %v21, %v32
  %v42 = vmul.f32 %v22, %v32
  %v43 = vmul.f32 %v23, %v32
  %v44 = vmul.f32 %v24, %v32
  %v45 = vmul.f32 %v25, %v32
  %v46 = vmul.f32 %v26, %v32
  %v47 = vmul.f32 %v27, %v32
  %v48 = vmul.f32 %v28, %v32
  %v49 = vlaneseq
  %v50 = vshrl.u32 %v49, 7
  %v51 = vsub.s32 0, %v50
  %v52 = vrot.slane %v12, %v51
  %v53 = vadd.f32 %v33, %v52
  %v54 = vadd.f32 %v34, %v52
  %v55 = vadd.f32 %v35, %v52
  %v56 = vadd.f32 %v36, %v52
  %v57 = vadd.f32 %v37, %v52
  %v58 = vadd.f32 %v38, %v52
  %v59 = vadd.f32 %v39, %v52
  %v60 = vadd.f32 %v40, %v52
  %v61 = vadd.f32 %v41, %v52
  %v62 = vadd.f32 %v42, %v52
  %v63 = vadd.f32 %v43, %v52
  %v64 = vadd.f32 %v44, %v52
  %v65 = vadd.f32 %v45, %v52
  %v66 = vadd.f32 %v46, %v52
  %v67 = vadd.f32 %v47, %v52
  %v68 = vadd.f32 %v48, %v52
  %vm69 = vcmask 64512
  %70 = vst.msk [vmem:[%s2] sm:$0xff] %vm69, %v53
  %71 = vst.msk [vmem:[%s2 + $0x8] sm:$0xff] %vm69, %v54
  %72 = vst.msk [vmem:[%s2 + $0x10] sm:$0xff] %vm69, %v55
  %73 = vst.msk [vmem:[%s2 + $0x18] sm:$0xff] %vm69, %v56
  %74 = vst.msk [vmem:[%s2 + $0x20] sm:$0xff] %vm69, %v57
  %75 = vst.msk [vmem:[%s2 + $0x28] sm:$0xff] %vm69, %v58
  %76 = vst.msk [vmem:[%s2 + $0x30] sm:$0xff] %vm69, %v59
  %77 = vst.msk [vmem:[%s2 + $0x38] sm:$0xff] %vm69, %v60
  %78 = vst.msk [vmem:[%s2 + $0x40] sm:$0xff] %vm69, %v61
  %79 = vst.msk [vmem:[%s2 + $0x48] sm:$0xff] %vm69, %v62
  %80 = vst.msk [vmem:[%s2 + $0x50] sm:$0xff] %vm69, %v63
  %81 = vst.msk [vmem:[%s2 + $0x58] sm:$0xff] %vm69, %v64
  %82 = vst.msk [vmem:[%s2 + $0x60] sm:$0xff] %vm69, %v65
  %83 = vst.msk [vmem:[%s2 + $0x68] sm:$0xff] %vm69, %v66
  %84 = vst.msk [vmem:[%s2 + $0x70] sm:$0xff] %vm69, %v67
  %85 = vst.msk [vmem:[%s2 + $0x78] sm:$0xff] %vm69, %v68
  // Predicated region
  $region10: #{factorized_reduce.3} parent=0 // pred_check
    _
  $region11: #{factorized_reduce.3} parent=0 // pred_check_branch
    %87 = sbr.rel (0) target = $region13
  $region12: #{factorized_reduce.3} parent=0 // pred_region
    _
  $region13: #{factorized_reduce.3} parent=0 // pred_fallthru
    _
  // Predicated region
  $region14: #{factorized_reduce.3} parent=0 // pred_check
    _
  $region15: #{factorized_reduce.3} parent=0 // pred_check_branch
    %89 = sbr.rel (0) target = $region17
  $region16: #{factorized_reduce.3} parent=0 // pred_region
    _
  $region17: #{factorized_reduce.3} parent=0 // pred_fallthru
    _

// kernel: factorized_reduce.2
$region0: #{factorized_reduce.2}
  #allocation0 [shape = 'u32[]', space=smem, size = 0x4, offset = 0x4, fixed_abs, tag = 'smem constant byte address 0x4 - core index']
  #allocation1 [shape = 'u32[144,128]{1,0:T(1,128)}', space=vmem, size = 0x12000, scoped, tag = 'internal scratch']
  %s0 = inlined_call_operand.vmem [shape: f32[128,4], index: 0, kind: input, shape index: {}]
  %s1 = inlined_call_operand.vmem [shape: f32[128,4], index: 1, kind: input, shape index: {}]
  %s2 = inlined_call_operand.vmem [shape: f32[4,4], index: 2, kind: input, shape index: {}]
  %s3 = inlined_call_operand.vmem [shape: f32[4,4], index: 3, kind: input, shape index: {}]
  %s4 = inlined_call_operand.vmem [shape: f32[1,8], index: 4, kind: input, shape index: {}]
  %s5 = inlined_call_operand.vmem [shape: f32[1,8], index: 5, kind: input, shape index: {}]
  %s6 = inlined_call_operand.vmem [shape: f32[128,8], index: 6, kind: output, shape index: {0}]
  %s7 = inlined_call_operand.vmem [shape: f32[2,8], index: 7, kind: output, shape index: {1}]
  %8 = xla_tuple %s6, %s7
  %s9 = sld [smem:[#allocation0]]
  $region50: #{factorized_reduce.2} parent=0
    _
  %s11 = ssub.s32 1, %s9
  %s12 = scalar_select 0, %s11, %s9
  // Predicated region
  $region2: #{factorized_reduce.2} parent=0 // pred_check
    _
  $region3: #{factorized_reduce.2} parent=0 // pred_check_branch
    %14 = sbr.rel (0) target = $region5
  $region4: #{factorized_reduce.2} parent=0 // pred_region
    _
  $region5: #{factorized_reduce.2} parent=0 // pred_fallthru
    _
  // Predicated region
  $region6: #{factorized_reduce.2} parent=0 // pred_check
    _
  $region7: #{factorized_reduce.2} parent=0 // pred_check_branch
    %16 = sbr.rel (0) target = $region9
  $region8: #{factorized_reduce.2} parent=0 // pred_region
    _
  $region9: #{factorized_reduce.2} parent=0 // pred_fallthru
    _
  // Predicated region
  $region10: #{factorized_reduce.2} parent=0 // pred_check
    _
  $region11: #{factorized_reduce.2} parent=0 // pred_check_branch
    %18 = sbr.rel (0) target = $region13
  $region12: #{factorized_reduce.2} parent=0 // pred_region
    _
  $region13: #{factorized_reduce.2} parent=0 // pred_fallthru
    _
  // Predicated region
  $region14: #{factorized_reduce.2} parent=0 // pred_check
    _
  $region15: #{factorized_reduce.2} parent=0 // pred_check_branch
    %20 = sbr.rel (0) target = $region17
  $region16: #{factorized_reduce.2} parent=0 // pred_region
    _
  $region17: #{factorized_reduce.2} parent=0 // pred_fallthru
    _
  // Predicated region
  $region18: #{factorized_reduce.2} parent=0 // pred_check
    _
  $region19: #{factorized_reduce.2} parent=0 // pred_check_branch
    %22 = sbr.rel (0) target = $region21
  $region20: #{factorized_reduce.2} parent=0 // pred_region
    _
  $region21: #{factorized_reduce.2} parent=0 // pred_fallthru
    _
  // Predicated region
  $region22: #{factorized_reduce.2} parent=0 // pred_check
    _
  $region23: #{factorized_reduce.2} parent=0 // pred_check_branch
    %24 = sbr.rel (0) target = $region25
  $region24: #{factorized_reduce.2} parent=0 // pred_region
    _
  $region25: #{factorized_reduce.2} parent=0 // pred_fallthru
    _
  %p25 = scmp.eq.s32.totalorder 0, 0
  // Predicated region
  $region26: #{factorized_reduce.2} parent=0 // pred_check
    %p26 = pneg %p25
  $region27: #{factorized_reduce.2} parent=0 // pred_check_branch
    %28 = sbr.rel (%p26) target = $region29
  $region28: #{factorized_reduce.2} parent=0 // pred_region
    %vm29 = vcmask 58368
    %30 = vst.msk [vmem:[%s7] sm:$0x3] %vm29, 0.0
  $region29: #{factorized_reduce.2} parent=0 // pred_fallthru
    _
  %v31 = vld [vmem:[%s0] sm:$0xff]
  %v32 = vld [vmem:[%s0 + $0x8] sm:$0xff]
  %v33 = vld [vmem:[%s0 + $0x10] sm:$0xff]
  %v34 = vld [vmem:[%s0 + $0x18] sm:$0xff]
  %v35 = vld [vmem:[%s0 + $0x20] sm:$0xff]
  %v36 = vld [vmem:[%s0 + $0x28] sm:$0xff]
  %v37 = vld [vmem:[%s0 + $0x30] sm:$0xff]
  %v38 = vld [vmem:[%s0 + $0x38] sm:$0xff]
  %v39 = vld [vmem:[%s0 + $0x40] sm:$0xff]
  %v40 = vld [vmem:[%s0 + $0x48] sm:$0xff]
  %v41 = vld [vmem:[%s0 + $0x50] sm:$0xff]
  %v42 = vld [vmem:[%s0 + $0x58] sm:$0xff]
  %v43 = vld [vmem:[%s0 + $0x60] sm:$0xff]
  %v44 = vld [vmem:[%s0 + $0x68] sm:$0xff]
  %v45 = vld [vmem:[%s0 + $0x70] sm:$0xff]
  %v46 = vld [vmem:[%s0 + $0x78] sm:$0xff]
  %v47 = vmax.f32 %v31, 0.0
  %v48 = vmax.f32 %v32, 0.0
  %v49 = vmax.f32 %v33, 0.0
  %v50 = vmax.f32 %v34, 0.0
  %v51 = vmax.f32 %v35, 0.0
  %v52 = vmax.f32 %v36, 0.0
  %v53 = vmax.f32 %v37, 0.0
  %v54 = vmax.f32 %v38, 0.0
  %v55 = vmax.f32 %v39, 0.0
  %v56 = vmax.f32 %v40, 0.0
  %v57 = vmax.f32 %v41, 0.0
  %v58 = vmax.f32 %v42, 0.0
  %v59 = vmax.f32 %v43, 0.0
  %v60 = vmax.f32 %v44, 0.0
  %v61 = vmax.f32 %v45, 0.0
  %v62 = vmax.f32 %v46, 0.0
  %v63 = vld [vmem:[%s1] sm:$0xff]
  %v64 = vld [vmem:[%s1 + $0x8] sm:$0xff]
  %v65 = vld [vmem:[%s1 + $0x10] sm:$0xff]
  %v66 = vld [vmem:[%s1 + $0x18] sm:$0xff]
  %v67 = vld [vmem:[%s1 + $0x20] sm:$0xff]
  %v68 = vld [vmem:[%s1 + $0x28] sm:$0xff]
  %v69 = vld [vmem:[%s1 + $0x30] sm:$0xff]
  %v70 = vld [vmem:[%s1 + $0x38] sm:$0xff]
  %v71 = vld [vmem:[%s1 + $0x40] sm:$0xff]
  %v72 = vld [vmem:[%s1 + $0x48] sm:$0xff]
  %v73 = vld [vmem:[%s1 + $0x50] sm:$0xff]
  %v74 = vld [vmem:[%s1 + $0x58] sm:$0xff]
  %v75 = vld [vmem:[%s1 + $0x60] sm:$0xff]
  %v76 = vld [vmem:[%s1 + $0x68] sm:$0xff]
  %v77 = vld [vmem:[%s1 + $0x70] sm:$0xff]
  %v78 = vld [vmem:[%s1 + $0x78] sm:$0xff]
  %v79 = vmax.f32 %v63, 0.0
  %v80 = vmax.f32 %v64, 0.0
  %v81 = vmax.f32 %v65, 0.0
  %v82 = vmax.f32 %v66, 0.0
  %v83 = vmax.f32 %v67, 0.0
  %v84 = vmax.f32 %v68, 0.0
  %v85 = vmax.f32 %v69, 0.0
  %v86 = vmax.f32 %v70, 0.0
  %v87 = vmax.f32 %v71, 0.0
  %v88 = vmax.f32 %v72, 0.0
  %v89 = vmax.f32 %v73, 0.0
  %v90 = vmax.f32 %v74, 0.0
  %v91 = vmax.f32 %v75, 0.0
  %v92 = vmax.f32 %v76, 0.0
  %v93 = vmax.f32 %v77, 0.0
  %v94 = vmax.f32 %v78, 0.0
  %v95 = vld [vmem:[%s2] sm:$0xf]
  %vm96 = vcmask 31744
  %v98 = vsel %vm96, %v47, 0
  %v101 = vsel %vm96, %v48, 0
  %v104 = vsel %vm96, %v49, 0
  %v107 = vsel %vm96, %v50, 0
  %v110 = vsel %vm96, %v51, 0
  %v113 = vsel %vm96, %v52, 0
  %v116 = vsel %vm96, %v53, 0
  %v119 = vsel %vm96, %v54, 0
  %v122 = vsel %vm96, %v55, 0
  %v125 = vsel %vm96, %v56, 0
  %v128 = vsel %vm96, %v57, 0
  %v131 = vsel %vm96, %v58, 0
  %v134 = vsel %vm96, %v59, 0
  %v137 = vsel %vm96, %v60, 0
  %v140 = vsel %vm96, %v61, 0
  %v143 = vsel %vm96, %v62, 0
  %vm145 = vcmask 1043456
  %v147 = vsel %vm145, %v95, 0
  %149 = vmatprep.subr.mxu0 0.0
  %150 = vmatpush1.msra.mxu0 %v147
  %151 = vmatprep.subr.mxu0 0.0
  %152 = vmatpush1.msra.mxu0 0.0
  %153 = vmatprep.subr.mxu0 0.0
  %154 = vmatpush1.msra.mxu0 0.0
  %155 = vmatprep.subr.mxu0 0.0
  %156 = vmatpush1.msra.mxu0 0.0
  %157 = vmatprep.subr.mxu0 0.0
  %158 = vmatpush1.msra.mxu0 0.0
  %159 = vmatprep.subr.mxu0 0.0
  %160 = vmatpush1.msra.mxu0 0.0
  %161 = vmatprep.subr.mxu0 0.0
  %162 = vmatpush1.msra.mxu0 0.0
  %163 = vmatprep.subr.mxu0 0.0
  %164 = vmatpush1.msra.mxu0 0.0
  %165 = vmatprep.subr.mxu0 0.0
  %166 = vmatpush1.msra.mxu0 0.0
  %167 = vmatprep.subr.mxu0 0.0
  %168 = vmatpush1.msra.mxu0 0.0
  %169 = vmatprep.subr.mxu0 0.0
  %170 = vmatpush1.msra.mxu0 0.0
  %171 = vmatprep.subr.mxu0 0.0
  %172 = vmatpush1.msra.mxu0 0.0
  %173 = vmatprep.subr.mxu0 0.0
  %174 = vmatpush1.msra.mxu0 0.0
  %175 = vmatprep.subr.mxu0 0.0
  %176 = vmatpush1.msra.mxu0 0.0
  %177 = vmatprep.subr.mxu0 0.0
  %178 = vmatpush1.msra.mxu0 0.0
  %179 = vmatprep.subr.mxu0 0.0
  %180 = vmatpush1.msra.mxu0 0.0
  %181 = vmatprep.subr.mxu0 0.0
  %182 = vmatpush1.msra.mxu0 0.0
  %183 = vmatprep.subr.mxu0 0.0
  %184 = vmatpush1.msra.mxu0 0.0
  %185 = vmatprep.subr.mxu0 0.0
  %186 = vmatpush1.msra.mxu0 0.0
  %187 = vmatprep.subr.mxu0 0.0
  %188 = vmatpush1.msra.mxu0 0.0
  %189 = vmatprep.subr.mxu0 0.0
  %190 = vmatpush1.msra.mxu0 0.0
  %191 = vmatprep.subr.mxu0 0.0
  %192 = vmatpush1.msra.mxu0 0.0
  %193 = vmatprep.subr.mxu0 0.0
  %194 = vmatpush1.msra.mxu0 0.0
  %195 = vmatprep.subr.mxu0 0.0
  %196 = vmatpush1.msra.mxu0 0.0
  %197 = vmatprep.subr.mxu0 0.0
  %198 = vmatpush1.msra.mxu0 0.0
  %199 = vmatprep.subr.mxu0 0.0
  %200 = vmatpush1.msra.mxu0 0.0
  %201 = vmatprep.subr.mxu0 0.0
  %202 = vmatpush1.msra.mxu0 0.0
  %203 = vmatprep.subr.mxu0 0.0
  %204 = vmatpush1.msra.mxu0 0.0
  %205 = vmatprep.subr.mxu0 0.0
  %206 = vmatpush1.msra.mxu0 0.0
  %207 = vmatprep.subr.mxu0 0.0
  %208 = vmatpush1.msra.mxu0 0.0
  %209 = vmatprep.subr.mxu0 0.0
  %210 = vmatpush1.msra.mxu0 0.0
  %211 = vmatprep.subr.mxu0 0.0
  %212 = vmatpush1.msra.mxu0 0.0
  %213 = vmatprep.mubr.f32.mxu0 0.0
  %214 = vmatmul.mubr.f32.gmra.mrb[0].mxu0 %v98
  %v215 = vpop.f32.mrb[0].mxu0
  %v216 = vadd.f32 0.0, %v215
  %v217 = vpop.f32.mrb[0].mxu0
  %218 = vmatprep.mubr.f32.mxu0 0.0
  %219 = vmatmul.mubr.f32.gmra.mrb[0].mxu0 %v101
  %v220 = vpop.f32.mrb[0].mxu0
  %v221 = vadd.f32 0.0, %v220
  %v222 = vpop.f32.mrb[0].mxu0
  %223 = vmatprep.mubr.f32.mxu0 0.0
  %224 = vmatmul.mubr.f32.gmra.mrb[0].mxu0 %v104
  %v225 = vpop.f32.mrb[0].mxu0
  %v226 = vadd.f32 0.0, %v225
  %v227 = vpop.f32.mrb[0].mxu0
  %228 = vmatprep.mubr.f32.mxu0 0.0
  %229 = vmatmul.mubr.f32.gmra.mrb[0].mxu0 %v107
  %v230 = vpop.f32.mrb[0].mxu0
  %v231 = vadd.f32 0.0, %v230
  %v232 = vpop.f32.mrb[0].mxu0
  %233 = vmatprep.mubr.f32.mxu0 0.0
  %234 = vmatmul.mubr.f32.gmra.mrb[0].mxu0 %v110
  %v235 = vpop.f32.mrb[0].mxu0
  %v236 = vadd.f32 0.0, %v235
  %v237 = vpop.f32.mrb[0].mxu0
  %238 = vmatprep.mubr.f32.mxu0 0.0
  %239 = vmatmul.mubr.f32.gmra.mrb[0].mxu0 %v113
  %v240 = vpop.f32.mrb[0].mxu0
  %v241 = vadd.f32 0.0, %v240
  %v242 = vpop.f32.mrb[0].mxu0
  %243 = vmatprep.mubr.f32.mxu0 0.0
  %244 = vmatmul.mubr.f32.gmra.mrb[0].mxu0 %v116
  %v245 = vpop.f32.mrb[0].mxu0
  %v246 = vadd.f32 0.0, %v245
  %v247 = vpop.f32.mrb[0].mxu0
  %248 = vmatprep.mubr.f32.mxu0 0.0
  %249 = vmatmul.mubr.f32.gmra.mrb[0].mxu0 %v119
  %v250 = vpop.f32.mrb[0].mxu0
  %v251 = vadd.f32 0.0, %v250
  %v252 = vpop.f32.mrb[0].mxu0
  %253 = vmatprep.mubr.f32.mxu0 0.0
  %254 = vmatmul.mubr.f32.gmra.mrb[0].mxu0 %v122
  %v255 = vpop.f32.mrb[0].mxu0
  %v256 = vadd.f32 0.0, %v255
  %v257 = vpop.f32.mrb[0].mxu0
  %258 = vmatprep.mubr.f32.mxu0 0.0
  %259 = vmatmul.mubr.f32.gmra.mrb[0].mxu0 %v125
  %v260 = vpop.f32.mrb[0].mxu0
  %v261 = vadd.f32 0.0, %v260
  %v262 = vpop.f32.mrb[0].mxu0
  %263 = vmatprep.mubr.f32.mxu0 0.0
  %264 = vmatmul.mubr.f32.gmra.mrb[0].mxu0 %v128
  %v265 = vpop.f32.mrb[0].mxu0
  %v266 = vadd.f32 0.0, %v265
  %v267 = vpop.f32.mrb[0].mxu0
  %268 = vmatprep.mubr.f32.mxu0 0.0
  %269 = vmatmul.mubr.f32.gmra.mrb[0].mxu0 %v131
  %v270 = vpop.f32.mrb[0].mxu0
  %v271 = vadd.f32 0.0, %v270
  %v272 = vpop.f32.mrb[0].mxu0
  %273 = vmatprep.mubr.f32.mxu0 0.0
  %274 = vmatmul.mubr.f32.gmra.mrb[0].mxu0 %v134
  %v275 = vpop.f32.mrb[0].mxu0
  %v276 = vadd.f32 0.0, %v275
  %v277 = vpop.f32.mrb[0].mxu0
  %278 = vmatprep.mubr.f32.mxu0 0.0
  %279 = vmatmul.mubr.f32.gmra.mrb[0].mxu0 %v137
  %v280 = vpop.f32.mrb[0].mxu0
  %v281 = vadd.f32 0.0, %v280
  %v282 = vpop.f32.mrb[0].mxu0
  %283 = vmatprep.mubr.f32.mxu0 0.0
  %284 = vmatmul.mubr.f32.gmra.mrb[0].mxu0 %v140
  %v285 = vpop.f32.mrb[0].mxu0
  %v286 = vadd.f32 0.0, %v285
  %v287 = vpop.f32.mrb[0].mxu0
  %288 = vmatprep.mubr.f32.mxu0 0.0
  %289 = vmatmul.mubr.f32.gmra.mrb[0].mxu0 %v143
  %v290 = vpop.f32.mrb[0].mxu0
  %v291 = vadd.f32 0.0, %v290
  %v292 = vpop.f32.mrb[0].mxu0
  %293 = vdwg.mxu0
  %v294 = vld [vmem:[%s3] sm:$0xf]
  %v296 = vsel %vm96, %v79, 0
  %v299 = vsel %vm96, %v80, 0
  %v302 = vsel %vm96, %v81, 0
  %v305 = vsel %vm96, %v82, 0
  %v308 = vsel %vm96, %v83, 0
  %v311 = vsel %vm96, %v84, 0
  %v314 = vsel %vm96, %v85, 0
  %v317 = vsel %vm96, %v86, 0
  %v320 = vsel %vm96, %v87, 0
  %v323 = vsel %vm96, %v88, 0
  %v326 = vsel %vm96, %v89, 0
  %v329 = vsel %vm96, %v90, 0
  %v332 = vsel %vm96, %v91, 0
  %v335 = vsel %vm96, %v92, 0
  %v338 = vsel %vm96, %v93, 0
  %v341 = vsel %vm96, %v94, 0
  %v344 = vsel %vm145, %v294, 0
  %346 = vmatprep.subr.mxu0 0.0
  %347 = vmatpush1.msra.mxu0 %v344
  %348 = vmatprep.subr.mxu0 0.0
  %349 = vmatpush1.msra.mxu0 0.0
  %350 = vmatprep.subr.mxu0 0.0
  %351 = vmatpush1.msra.mxu0 0.0
  %352 = vmatprep.subr.mxu0 0.0
  %353 = vmatpush1.msra.mxu0 0.0
  %354 = vmatprep.subr.mxu0 0.0
  %355 = vmatpush1.msra.mxu0 0.0
  %356 = vmatprep.subr.mxu0 0.0
  %357 = vmatpush1.msra.mxu0 0.0
  %358 = vmatprep.subr.mxu0 0.0
  %359 = vmatpush1.msra.mxu0 0.0
  %360 = vmatprep.subr.mxu0 0.0
  %361 = vmatpush1.msra.mxu0 0.0
  %362 = vmatprep.subr.mxu0 0.0
  %363 = vmatpush1.msra.mxu0 0.0
  %364 = vmatprep.subr.mxu0 0.0
  %365 = vmatpush1.msra.mxu0 0.0
  %366 = vmatprep.subr.mxu0 0.0
  %367 = vmatpush1.msra.mxu0 0.0
  %368 = vmatprep.subr.mxu0 0.0
  %369 = vmatpush1.msra.mxu0 0.0
  %370 = vmatprep.subr.mxu0 0.0
  %371 = vmatpush1.msra.mxu0 0.0
  %372 = vmatprep.subr.mxu0 0.0
  %373 = vmatpush1.msra.mxu0 0.0
  %374 = vmatprep.subr.mxu0 0.0
  %375 = vmatpush1.msra.mxu0 0.0
  %376 = vmatprep.subr.mxu0 0.0
  %377 = vmatpush1.msra.mxu0 0.0
  %378 = vmatprep.subr.mxu0 0.0
  %379 = vmatpush1.msra.mxu0 0.0
  %380 = vmatprep.subr.mxu0 0.0
  %381 = vmatpush1.msra.mxu0 0.0
  %382 = vmatprep.subr.mxu0 0.0
  %383 = vmatpush1.msra.mxu0 0.0
  %384 = vmatprep.subr.mxu0 0.0
  %385 = vmatpush1.msra.mxu0 0.0
  %386 = vmatprep.subr.mxu0 0.0
  %387 = vmatpush1.msra.mxu0 0.0
  %388 = vmatprep.subr.mxu0 0.0
  %389 = vmatpush1.msra.mxu0 0.0
  %390 = vmatprep.subr.mxu0 0.0
  %391 = vmatpush1.msra.mxu0 0.0
  %392 = vmatprep.subr.mxu0 0.0
  %393 = vmatpush1.msra.mxu0 0.0
  %394 = vmatprep.subr.mxu0 0.0
  %395 = vmatpush1.msra.mxu0 0.0
  %396 = vmatprep.subr.mxu0 0.0
  %397 = vmatpush1.msra.mxu0 0.0
  %398 = vmatprep.subr.mxu0 0.0
  %399 = vmatpush1.msra.mxu0 0.0
  %400 = vmatprep.subr.mxu0 0.0
  %401 = vmatpush1.msra.mxu0 0.0
  %402 = vmatprep.subr.mxu0 0.0
  %403 = vmatpush1.msra.mxu0 0.0
  %404 = vmatprep.subr.mxu0 0.0
  %405 = vmatpush1.msra.mxu0 0.0
  %406 = vmatprep.subr.mxu0 0.0
  %407 = vmatpush1.msra.mxu0 0.0
  %408 = vmatprep.subr.mxu0 0.0
  %409 = vmatpush1.msra.mxu0 0.0
  %410 = vmatprep.mubr.f32.mxu0 0.0
  %411 = vmatmul.mubr.f32.gmra.mrb[0].mxu0 %v296
  %v412 = vpop.f32.mrb[0].mxu0
  %v413 = vadd.f32 0.0, %v412
  %v414 = vpop.f32.mrb[0].mxu0
  %415 = vmatprep.mubr.f32.mxu0 0.0
  %416 = vmatmul.mubr.f32.gmra.mrb[0].mxu0 %v299
  %v417 = vpop.f32.mrb[0].mxu0
  %v418 = vadd.f32 0.0, %v417
  %v419 = vpop.f32.mrb[0].mxu0
  %420 = vmatprep.mubr.f32.mxu0 0.0
  %421 = vmatmul.mubr.f32.gmra.mrb[0].mxu0 %v302
  %v422 = vpop.f32.mrb[0].mxu0
  %v423 = vadd.f32 0.0, %v422
  %v424 = vpop.f32.mrb[0].mxu0
  %425 = vmatprep.mubr.f32.mxu0 0.0
  %426 = vmatmul.mubr.f32.gmra.mrb[0].mxu0 %v305
  %v427 = vpop.f32.mrb[0].mxu0
  %v428 = vadd.f32 0.0, %v427
  %v429 = vpop.f32.mrb[0].mxu0
  %430 = vmatprep.mubr.f32.mxu0 0.0
  %431 = vmatmul.mubr.f32.gmra.mrb[0].mxu0 %v308
  %v432 = vpop.f32.mrb[0].mxu0
  %v433 = vadd.f32 0.0, %v432
  %v434 = vpop.f32.mrb[0].mxu0
  %435 = vmatprep.mubr.f32.mxu0 0.0
  %436 = vmatmul.mubr.f32.gmra.mrb[0].mxu0 %v311
  %v437 = vpop.f32.mrb[0].mxu0
  %v438 = vadd.f32 0.0, %v437
  %v439 = vpop.f32.mrb[0].mxu0
  %440 = vmatprep.mubr.f32.mxu0 0.0
  %441 = vmatmul.mubr.f32.gmra.mrb[0].mxu0 %v314
  %v442 = vpop.f32.mrb[0].mxu0
  %v443 = vadd.f32 0.0, %v442
  %v444 = vpop.f32.mrb[0].mxu0
  %445 = vmatprep.mubr.f32.mxu0 0.0
  %446 = vmatmul.mubr.f32.gmra.mrb[0].mxu0 %v317
  %v447 = vpop.f32.mrb[0].mxu0
  %v448 = vadd.f32 0.0, %v447
  %v449 = vpop.f32.mrb[0].mxu0
  %450 = vmatprep.mubr.f32.mxu0 0.0
  %451 = vmatmul.mubr.f32.gmra.mrb[0].mxu0 %v320
  %v452 = vpop.f32.mrb[0].mxu0
  %v453 = vadd.f32 0.0, %v452
  %v454 = vpop.f32.mrb[0].mxu0
  %455 = vmatprep.mubr.f32.mxu0 0.0
  %456 = vmatmul.mubr.f32.gmra.mrb[0].mxu0 %v323
  %v457 = vpop.f32.mrb[0].mxu0
  %v458 = vadd.f32 0.0, %v457
  %v459 = vpop.f32.mrb[0].mxu0
  %460 = vmatprep.mubr.f32.mxu0 0.0
  %461 = vmatmul.mubr.f32.gmra.mrb[0].mxu0 %v326
  %v462 = vpop.f32.mrb[0].mxu0
  %v463 = vadd.f32 0.0, %v462
  %v464 = vpop.f32.mrb[0].mxu0
  %465 = vmatprep.mubr.f32.mxu0 0.0
  %466 = vmatmul.mubr.f32.gmra.mrb[0].mxu0 %v329
  %v467 = vpop.f32.mrb[0].mxu0
  %v468 = vadd.f32 0.0, %v467
  %v469 = vpop.f32.mrb[0].mxu0
  %470 = vmatprep.mubr.f32.mxu0 0.0
  %471 = vmatmul.mubr.f32.gmra.mrb[0].mxu0 %v332
  %v472 = vpop.f32.mrb[0].mxu0
  %v473 = vadd.f32 0.0, %v472
  %v474 = vpop.f32.mrb[0].mxu0
  %475 = vmatprep.mubr.f32.mxu0 0.0
  %476 = vmatmul.mubr.f32.gmra.mrb[0].mxu0 %v335
  %v477 = vpop.f32.mrb[0].mxu0
  %v478 = vadd.f32 0.0, %v477
  %v479 = vpop.f32.mrb[0].mxu0
  %480 = vmatprep.mubr.f32.mxu0 0.0
  %481 = vmatmul.mubr.f32.gmra.mrb[0].mxu0 %v338
  %v482 = vpop.f32.mrb[0].mxu0
  %v483 = vadd.f32 0.0, %v482
  %v484 = vpop.f32.mrb[0].mxu0
  %485 = vmatprep.mubr.f32.mxu0 0.0
  %486 = vmatmul.mubr.f32.gmra.mrb[0].mxu0 %v341
  %v487 = vpop.f32.mrb[0].mxu0
  %v488 = vadd.f32 0.0, %v487
  %v489 = vpop.f32.mrb[0].mxu0
  %490 = vdwg.mxu0
  %491 = vst.msk [vmem:[%s6] sm:$0xff] %vm96, %v216
  %492 = vst.msk [vmem:[%s6 + $0x8] sm:$0xff] %vm96, %v221
  %493 = vst.msk [vmem:[%s6 + $0x10] sm:$0xff] %vm96, %v226
  %494 = vst.msk [vmem:[%s6 + $0x18] sm:$0xff] %vm96, %v231
  %495 = vst.msk [vmem:[%s6 + $0x20] sm:$0xff] %vm96, %v236
  %496 = vst.msk [vmem:[%s6 + $0x28] sm:$0xff] %vm96, %v241
  %497 = vst.msk [vmem:[%s6 + $0x30] sm:$0xff] %vm96, %v246
  %498 = vst.msk [vmem:[%s6 + $0x38] sm:$0xff] %vm96, %v251
  %499 = vst.msk [vmem:[%s6 + $0x40] sm:$0xff] %vm96, %v256
  %500 = vst.msk [vmem:[%s6 + $0x48] sm:$0xff] %vm96, %v261
  %501 = vst.msk [vmem:[%s6 + $0x50] sm:$0xff] %vm96, %v266
  %502 = vst.msk [vmem:[%s6 + $0x58] sm:$0xff] %vm96, %v271
  %503 = vst.msk [vmem:[%s6 + $0x60] sm:$0xff] %vm96, %v276
  %504 = vst.msk [vmem:[%s6 + $0x68] sm:$0xff] %vm96, %v281
  %505 = vst.msk [vmem:[%s6 + $0x70] sm:$0xff] %vm96, %v286
  %506 = vst.msk [vmem:[%s6 + $0x78] sm:$0xff] %vm96, %v291
  %523 = vrot.lane.b32.xlu0 %v413, 4
  %v524 = vpop.permute.xlu0 %523
  %525 = vrot.lane.b32.xlu0 %v418, 4
  %v526 = vpop.permute.xlu0 %525
  %527 = vrot.lane.b32.xlu0 %v423, 4
  %v528 = vpop.permute.xlu0 %527
  %529 = vrot.lane.b32.xlu0 %v428, 4
  %v530 = vpop.permute.xlu0 %529
  %531 = vrot.lane.b32.xlu0 %v433, 4
  %v532 = vpop.permute.xlu0 %531
  %533 = vrot.lane.b32.xlu0 %v438, 4
  %v534 = vpop.permute.xlu0 %533
  %535 = vrot.lane.b32.xlu0 %v443, 4
  %v536 = vpop.permute.xlu0 %535
  %537 = vrot.lane.b32.xlu0 %v448, 4
  %v538 = vpop.permute.xlu0 %537
  %539 = vrot.lane.b32.xlu0 %v453, 4
  %v540 = vpop.permute.xlu0 %539
  %541 = vrot.lane.b32.xlu0 %v458, 4
  %v542 = vpop.permute.xlu0 %541
  %543 = vrot.lane.b32.xlu0 %v463, 4
  %v544 = vpop.permute.xlu0 %543
  %545 = vrot.lane.b32.xlu0 %v468, 4
  %v546 = vpop.permute.xlu0 %545
  %547 = vrot.lane.b32.xlu0 %v473, 4
  %v548 = vpop.permute.xlu0 %547
  %549 = vrot.lane.b32.xlu0 %v478, 4
  %v550 = vpop.permute.xlu0 %549
  %551 = vrot.lane.b32.xlu0 %v483, 4
  %v552 = vpop.permute.xlu0 %551
  %553 = vrot.lane.b32.xlu0 %v488, 4
  %v554 = vpop.permute.xlu0 %553
  %vm571 = vcmask 64544
  %572 = vst.msk [vmem:[%s6] sm:$0xff] %vm571, %v524
  %573 = vst.msk [vmem:[%s6 + $0x8] sm:$0xff] %vm571, %v526
  %574 = vst.msk [vmem:[%s6 + $0x10] sm:$0xff] %vm571, %v528
  %575 = vst.msk [vmem:[%s6 + $0x18] sm:$0xff] %vm571, %v530
  %576 = vst.msk [vmem:[%s6 + $0x20] sm:$0xff] %vm571, %v532
  %577 = vst.msk [vmem:[%s6 + $0x28] sm:$0xff] %vm571, %v534
  %578 = vst.msk [vmem:[%s6 + $0x30] sm:$0xff] %vm571, %v536
  %579 = vst.msk [vmem:[%s6 + $0x38] sm:$0xff] %vm571, %v538
  %580 = vst.msk [vmem:[%s6 + $0x40] sm:$0xff] %vm571, %v540
  %581 = vst.msk [vmem:[%s6 + $0x48] sm:$0xff] %vm571, %v542
  %582 = vst.msk [vmem:[%s6 + $0x50] sm:$0xff] %vm571, %v544
  %583 = vst.msk [vmem:[%s6 + $0x58] sm:$0xff] %vm571, %v546
  %584 = vst.msk [vmem:[%s6 + $0x60] sm:$0xff] %vm571, %v548
  %585 = vst.msk [vmem:[%s6 + $0x68] sm:$0xff] %vm571, %v550
  %586 = vst.msk [vmem:[%s6 + $0x70] sm:$0xff] %vm571, %v552
  %587 = vst.msk [vmem:[%s6 + $0x78] sm:$0xff] %vm571, %v554
  %v588 = vld [vmem:[%s7] sm:$0x1]
  %v589 = vsel %vm96, %v216, 0.0
  %v590 = vsel %vm96, %v221, 0.0
  %v591 = vadd.f32 %v589, %v590
  %v592 = vsel %vm96, %v226, 0.0
  %v593 = vadd.f32 %v591, %v592
  %v594 = vsel %vm96, %v231, 0.0
  %v595 = vadd.f32 %v593, %v594
  %v596 = vsel %vm96, %v236, 0.0
  %v597 = vadd.f32 %v595, %v596
  %v598 = vsel %vm96, %v241, 0.0
  %v599 = vadd.f32 %v597, %v598
  %v600 = vsel %vm96, %v246, 0.0
  %v601 = vadd.f32 %v599, %v600
  %v602 = vsel %vm96, %v251, 0.0
  %v603 = vadd.f32 %v601, %v602
  %v604 = vsel %vm96, %v256, 0.0
  %v605 = vadd.f32 %v603, %v604
  %v606 = vsel %vm96, %v261, 0.0
  %v607 = vadd.f32 %v605, %v606
  %v608 = vsel %vm96, %v266, 0.0
  %v609 = vadd.f32 %v607, %v608
  %v610 = vsel %vm96, %v271, 0.0
  %v611 = vadd.f32 %v609, %v610
  %v612 = vsel %vm96, %v276, 0.0
  %v613 = vadd.f32 %v611, %v612
  %v614 = vsel %vm96, %v281, 0.0
  %v615 = vadd.f32 %v613, %v614
  %v616 = vsel %vm96, %v286, 0.0
  %v617 = vadd.f32 %v615, %v616
  %v618 = vsel %vm96, %v291, 0.0
  %v619 = vadd.f32 %v617, %v618
  %v620 = vrot.slane %v619, 4
  %v621 = vadd.f32 %v619, %v620
  %v622 = vrot.slane %v621, 2
  %v623 = vadd.f32 %v621, %v622
  %v624 = vrot.slane %v623, 1
  %v625 = vadd.f32 %v623, %v624
  %v626 = vadd.f32 %v588, %v625
  %vm627 = vcmask 24576
  %628 = vst.msk [vmem:[%s7] sm:$0x1] %vm627, %v626
  %v629 = vld [vmem:[%s7] sm:$0x1]
  %v630 = vsel %vm96, %v413, 0.0
  %v631 = vsel %vm96, %v418, 0.0
  %v632 = vadd.f32 %v630, %v631
  %v633 = vsel %vm96, %v423, 0.0
  %v634 = vadd.f32 %v632, %v633
  %v635 = vsel %vm96, %v428, 0.0
  %v636 = vadd.f32 %v634, %v635
  %v637 = vsel %vm96, %v433, 0.0
  %v638 = vadd.f32 %v636, %v637
  %v639 = vsel %vm96, %v438, 0.0
  %v640 = vadd.f32 %v638, %v639
  %v641 = vsel %vm96, %v443, 0.0
  %v642 = vadd.f32 %v640, %v641
  %v643 = vsel %vm96, %v448, 0.0
  %v644 = vadd.f32 %v642, %v643
  %v645 = vsel %vm96, %v453, 0.0
  %v646 = vadd.f32 %v644, %v645
  %v647 = vsel %vm96, %v458, 0.0
  %v648 = vadd.f32 %v646, %v647
  %v649 = vsel %vm96, %v463, 0.0
  %v650 = vadd.f32 %v648, %v649
  %v651 = vsel %vm96, %v468, 0.0
  %v652 = vadd.f32 %v650, %v651
  %v653 = vsel %vm96, %v473, 0.0
  %v654 = vadd.f32 %v652, %v653
  %v655 = vsel %vm96, %v478, 0.0
  %v656 = vadd.f32 %v654, %v655
  %v657 = vsel %vm96, %v483, 0.0
  %v658 = vadd.f32 %v656, %v657
  %v659 = vsel %vm96, %v488, 0.0
  %v660 = vadd.f32 %v658, %v659
  %v661 = vrot.slane %v660, 4
  %v662 = vadd.f32 %v660, %v661
  %v663 = vrot.slane %v662, 2
  %v664 = vadd.f32 %v662, %v663
  %v665 = vrot.slane %v664, 1
  %v666 = vadd.f32 %v664, %v665
  %668 = vrot.lane.b32.xlu0 %v666, 4
  %v669 = vpop.permute.xlu0 %668
  %v671 = vadd.f32 %v629, %v669
  %vm672 = vcmask 57376
  %673 = vst.msk [vmem:[%s7] sm:$0x1] %vm672, %v671
  %v674 = vld [vmem:[%s7 + $0x1] sm:$0x1]
  %v675 = vmul.f32 %v216, %v216
  %v676 = vmul.f32 %v221, %v221
  %v677 = vmul.f32 %v226, %v226
  %v678 = vmul.f32 %v231, %v231
  %v679 = vmul.f32 %v236, %v236
  %v680 = vmul.f32 %v241, %v241
  %v681 = vmul.f32 %v246, %v246
  %v682 = vmul.f32 %v251, %v251
  %v683 = vmul.f32 %v256, %v256
  %v684 = vmul.f32 %v261, %v261
  %v685 = vmul.f32 %v266, %v266
  %v686 = vmul.f32 %v271, %v271
  %v687 = vmul.f32 %v276, %v276
  %v688 = vmul.f32 %v281, %v281
  %v689 = vmul.f32 %v286, %v286
  %v690 = vmul.f32 %v291, %v291
  %v691 = vsel %vm96, %v675, 0.0
  %v692 = vsel %vm96, %v676, 0.0
  %v693 = vadd.f32 %v691, %v692
  %v694 = vsel %vm96, %v677, 0.0
  %v695 = vadd.f32 %v693, %v694
  %v696 = vsel %vm96, %v678, 0.0
  %v697 = vadd.f32 %v695, %v696
  %v698 = vsel %vm96, %v679, 0.0
  %v699 = vadd.f32 %v697, %v698
  %v700 = vsel %vm96, %v680, 0.0
  %v701 = vadd.f32 %v699, %v700
  %v702 = vsel %vm96, %v681, 0.0
  %v703 = vadd.f32 %v701, %v702
  %v704 = vsel %vm96, %v682, 0.0
  %v705 = vadd.f32 %v703, %v704
  %v706 = vsel %vm96, %v683, 0.0
  %v707 = vadd.f32 %v705, %v706
  %v708 = vsel %vm96, %v684, 0.0
  %v709 = vadd.f32 %v707, %v708
  %v710 = vsel %vm96, %v685, 0.0
  %v711 = vadd.f32 %v709, %v710
  %v712 = vsel %vm96, %v686, 0.0
  %v713 = vadd.f32 %v711, %v712
  %v714 = vsel %vm96, %v687, 0.0
  %v715 = vadd.f32 %v713, %v714
  %v716 = vsel %vm96, %v688, 0.0
  %v717 = vadd.f32 %v715, %v716
  %v718 = vsel %vm96, %v689, 0.0
  %v719 = vadd.f32 %v717, %v718
  %v720 = vsel %vm96, %v690, 0.0
  %v721 = vadd.f32 %v719, %v720
  %v722 = vrot.slane %v721, 4
  %v723 = vadd.f32 %v721, %v722
  %v724 = vrot.slane %v723, 2
  %v725 = vadd.f32 %v723, %v724
  %v726 = vrot.slane %v725, 1
  %v727 = vadd.f32 %v725, %v726
  %v728 = vadd.f32 %v674, %v727
  %729 = vst.msk [vmem:[%s7 + $0x1] sm:$0x1] %vm627, %v728
  %v730 = vld [vmem:[%s7 + $0x1] sm:$0x1]
  %v731 = vmul.f32 %v413, %v413
  %v732 = vmul.f32 %v418, %v418
  %v733 = vmul.f32 %v423, %v423
  %v734 = vmul.f32 %v428, %v428
  %v735 = vmul.f32 %v433, %v433
  %v736 = vmul.f32 %v438, %v438
  %v737 = vmul.f32 %v443, %v443
  %v738 = vmul.f32 %v448, %v448
  %v739 = vmul.f32 %v453, %v453
  %v740 = vmul.f32 %v458, %v458
  %v741 = vmul.f32 %v463, %v463
  %v742 = vmul.f32 %v468, %v468
  %v743 = vmul.f32 %v473, %v473
  %v744 = vmul.f32 %v478, %v478
  %v745 = vmul.f32 %v483, %v483
  %v746 = vmul.f32 %v488, %v488
  %v747 = vsel %vm96, %v731, 0.0
  %v748 = vsel %vm96, %v732, 0.0
  %v749 = vadd.f32 %v747, %v748
  %v750 = vsel %vm96, %v733, 0.0
  %v751 = vadd.f32 %v749, %v750
  %v752 = vsel %vm96, %v734, 0.0
  %v753 = vadd.f32 %v751, %v752
  %v754 = vsel %vm96, %v735, 0.0
  %v755 = vadd.f32 %v753, %v754
  %v756 = vsel %vm96, %v736, 0.0
  %v757 = vadd.f32 %v755, %v756
  %v758 = vsel %vm96, %v737, 0.0
  %v759 = vadd.f32 %v757, %v758
  %v760 = vsel %vm96, %v738, 0.0
  %v761 = vadd.f32 %v759, %v760
  %v762 = vsel %vm96, %v739, 0.0
  %v763 = vadd.f32 %v761, %v762
  %v764 = vsel %vm96, %v740, 0.0
  %v765 = vadd.f32 %v763, %v764
  %v766 = vsel %vm96, %v741, 0.0
  %v767 = vadd.f32 %v765, %v766
  %v768 = vsel %vm96, %v742, 0.0
  %v769 = vadd.f32 %v767, %v768
  %v770 = vsel %vm96, %v743, 0.0
  %v771 = vadd.f32 %v769, %v770
  %v772 = vsel %vm96, %v744, 0.0
  %v773 = vadd.f32 %v771, %v772
  %v774 = vsel %vm96, %v745, 0.0
  %v775 = vadd.f32 %v773, %v774
  %v776 = vsel %vm96, %v746, 0.0
  %v777 = vadd.f32 %v775, %v776
  %v778 = vrot.slane %v777, 4
  %v779 = vadd.f32 %v777, %v778
  %v780 = vrot.slane %v779, 2
  %v781 = vadd.f32 %v779, %v780
  %v782 = vrot.slane %v781, 1
  %v783 = vadd.f32 %v781, %v782
  %785 = vrot.lane.b32.xlu0 %v783, 4
  %v786 = vpop.permute.xlu0 %785
  %v788 = vadd.f32 %v730, %v786
  %789 = vst.msk [vmem:[%s7 + $0x1] sm:$0x1] %vm672, %v788
  // Predicated region
  $region30: #{factorized_reduce.2} parent=0 // pred_check
    %p790 = pneg %p25
  $region31: #{factorized_reduce.2} parent=0 // pred_check_branch
    %792 = sbr.rel (%p790) target = $region33
  $region32: #{factorized_reduce.2} parent=0 // pred_region
    %v793 = vld [vmem:[%s7] sm:$0x1]
    %v794 = vmul.f32 %v793, 0.0078125
    %v795 = vld [vmem:[%s7 + $0x1] sm:$0x1]
    %v796 = vmul.f32 %v795, 0.0078125
    %v797 = vmul.f32 %v794, %v794
    %v798 = vsub.f32 %v796, %v797
    %v799 = vadd.f32 %v798, 1e-05
    %v800 = vrsqrt.pop %v799
    %v801 = vld [vmem:[%s4] sm:$0x1]
    %v802 = vmul.f32 %v801, %v800
    %v803 = vld [vmem:[%s5] sm:$0x1]
    %v804 = vmul.f32 %v794, %v802
    %v805 = vsub.f32 %v803, %v804
    %vm806 = vcmask 57344
    %807 = vst.msk [vmem:[%s7] sm:$0x1] %vm806, %v802
    %808 = vst.msk [vmem:[%s7 + $0x1] sm:$0x1] %vm806, %v805
  $region33: #{factorized_reduce.2} parent=0 // pred_fallthru
    _
  // Predicated region
  $region34: #{factorized_reduce.2} parent=0 // pred_check
    _
  $region35: #{factorized_reduce.2} parent=0 // pred_check_branch
    %810 = sbr.rel (0) target = $region37
  $region36: #{factorized_reduce.2} parent=0 // pred_region
    _
  $region37: #{factorized_reduce.2} parent=0 // pred_fallthru
    _
  // Predicated region
  $region38: #{factorized_reduce.2} parent=0 // pred_check
    _
  $region39: #{factorized_reduce.2} parent=0 // pred_check_branch
    %812 = sbr.rel (0) target = $region41
  $region40: #{factorized_reduce.2} parent=0 // pred_region
    _
  $region41: #{factorized_reduce.2} parent=0 // pred_fallthru
    _
  // Predicated region
  $region42: #{factorized_reduce.2} parent=0 // pred_check
    _
  $region43: #{factorized_reduce.2} parent=0 // pred_check_branch
    %814 = sbr.rel (0) target = $region45
  $region44: #{factorized_reduce.2} parent=0 // pred_region
    _
  $region45: #{factorized_reduce.2} parent=0 // pred_fallthru
    _
  // Predicated region
  $region46: #{factorized_reduce.2} parent=0 // pred_check
    _
  $region47: #{factorized_reduce.2} parent=0 // pred_check_branch
    %816 = sbr.rel (0) target = $region49
  $region48: #{factorized_reduce.2} parent=0 // pred_region
    _
  $region49: #{factorized_reduce.2} parent=0 // pred_fallthru
    _

</llo_original>
